<compile_context>
chip_gen: v5e
topology: v5e:2x2
jax: 0.10.0
libtpu: 0.0.40
codegen_flags: <defaults>
</compile_context>

<pallas_src>
import functools

import jax
import jax.numpy as jnp
from jax import lax
from jax.experimental import pallas as pl
from jax.experimental.pallas import tpu as pltpu

_BN_EPS = 1e-5


@functools.cache
def _pltpu_roll_is_numpy_style() -> bool:
    """One-time probe (must run outside jit): does pltpu.roll follow np.roll's direction?

    Returns True iff pltpu.roll(x, s, axis)[i] == x[(i - s) % n].  The result is baked
    statically into the fused kernel so the im2col lane shifts are correct regardless of the
    installed JAX/Mosaic rotate convention.
    """
    x = jnp.arange(8 * 128, dtype=jnp.float32).reshape(8, 128)

    def k(x_ref, o_ref):
        o_ref[...] = pltpu.roll(x_ref[...], 1, axis=1)

    y = pl.pallas_call(k, out_shape=jax.ShapeDtypeStruct((8, 128), jnp.float32))(x)
    return bool(y[0, 1] == x[0, 0])


# ---------------------------------------------------------------------------
# Fused kernel: 4x (PReLU -> Conv KxK 'same' -> affine [-> maxout]) + MaxPool2d(2,2)
# One grid step = one (batch, row-strip) tile.  Activations are (C, strip_rows_with_halo * W) f32:
# channels on sublanes, flattened strip space on lanes.
# ---------------------------------------------------------------------------
def _encoding_cdb_kernel(slope_ref, x_ref, w_ref, sh_ref,
                         out4_ref, pool_ref, idx_ref,
                         *, K, H, W, C, S, HALO, roll_np):
    p = (K - 1) // 2
    Bh = S + 2 * HALO                       # strip rows incl. halo
    BHW = Bh * W                            # flat lane extent of the working buffer
    base = pl.program_id(1) * S - HALO      # global image row of local buffer row 0

    def lane_shift(v, s):
        # u[:, i] = v[:, i + s] (XLU lane rotate).  Lanes that wrap are either tap-masked
        # (column mask) or land in halo rows that are never consumed downstream.
        n = v.shape[-1]
        amt = ((-s) if roll_np else s) % n
        return pltpu.roll(v, amt, axis=1)

    # ---- hoisted lane coordinates + per-tap validity masks (built once, reused by all 4 stages)
    f = lax.broadcasted_iota(jnp.int32, (1, BHW), 1)
    lh = f // W                             # local row inside the strip buffer
    lw = f - lh * W                         # column
    gh = lh + base                          # global row (may fall outside [0,H) at image borders)

    taps_meta = []                          # [(lane shift, validity mask or None)]
    for kh in range(K):
        for kw in range(K):
            dh, dw = kh - p, kw - p
            row_ok = None if dh == 0 else (gh + dh >= 0) & (gh + dh < H)
            col_ok = None if dw == 0 else (lw + dw >= 0) & (lw + dw < W)
            if row_ok is None:
                m = col_ok                  # centre tap: m is None (always valid)
            elif col_ok is None:
                m = row_ok
            else:
                m = row_ok & col_ok
            taps_meta.append((dh * W + dw, m))

    def stage(z, w, shift, slope):
        """PReLU -> Conv(KxK, stride 1, 'same') -> +shift (conv bias + BN folded; BN scale in w)."""
        zp = jnp.where(z >= 0, z, slope * z)              # PReLU in f32; PReLU(0)=0 so pad is safe
        taps = []
        for s_lane, m in taps_meta:                       # shift+mask im2col, all in registers
            t = zp if s_lane == 0 else lane_shift(zp, s_lane)
            if m is not None:
                t = jnp.where(m, t, 0.0)
            taps.append(t.astype(jnp.bfloat16))           # patch built directly in bf16
        patch = jnp.concatenate(taps, axis=0)             # (K*K*C, BHW) bf16
        # Single MXU dot per stage, f32 accumulation.  (With C=64 at FastSurfer scale this fills
        # ~25% of a 256-row MXU; keep the lane dim (BHW) long so the weight load is amortized.)
        return jnp.dot(w, patch, preferred_element_type=jnp.float32) + shift

    x = x_ref[0, 0]                                        # (C, BHW) f32
    out1 = jnp.maximum(x,    stage(x,    w_ref[0], sh_ref[0], slope_ref[0]))
    out2 = jnp.maximum(out1, stage(out1, w_ref[1], sh_ref[1], slope_ref[1]))
    out3 = jnp.maximum(out2, stage(out2, w_ref[2], sh_ref[2], slope_ref[2]))
    out4 = stage(out3, w_ref[3], sh_ref[3], slope_ref[3])

    core = out4[:, HALO * W:(HALO + S) * W]                # (C, S*W) strip core (halo dropped)
    out4_ref[0] = core                                     # lane-dense store

    # ---- fused MaxPool2d(2,2) with PyTorch-style flat (h*W + w) indices ------------------------
    # Neighbour candidates come from 3 lane rolls (XLU) on the flat layout; only lanes at even
    # (row, col) positions are kept, so wrapped lanes are never selected.  One stride-2 compaction
    # per output instead of four strided gathers.
    SW, So, Wo = S * W, S // 2, W // 2
    fc = lax.broadcasted_iota(jnp.int32, (1, SW), 1)
    gidx = pl.program_id(1) * SW + fc                      # flat global index of each core lane
    best = core
    bidx = jnp.broadcast_to(gidx, (C, SW))
    for cand, off in ((lane_shift(core, 1), 1),
                      (lane_shift(core, W), W),
                      (lane_shift(core, W + 1), W + 1)):
        take = cand > best                                 # strict '>' keeps first max in scan order
        bidx = jnp.where(take, gidx + off, bidx)
        best = jnp.where(take, cand, best)
    # TODO(synk): NaN handling differs from torch (a NaN in a non-leading window slot is ignored).
    pool_ref[0] = best.reshape(C, So, 2, Wo, 2)[:, :, 0, :, 0].reshape(C, So * Wo)
    idx_ref[0] = bidx.reshape(C, So, 2, Wo, 2)[:, :, 0, :, 0].reshape(C, So * Wo)


# ---------------------------------------------------------------------------
# Wrapper: NCHW in / NCHW out, single pallas_call, grid over (batch, row strips).
# ---------------------------------------------------------------------------
def encoding_cdb_forward(x_nchw, weights, params, *, strip_rows=16):
    N, C_in, H, W = x_nchw.shape
    K = params["conv_kernel"]
    C = params["filters"]
    assert params["conv_stride"] == 1, "CDB convs are stride-1 'same' convolutions"
    assert params["pool_kernel"] == 2 and params["pool_stride"] == 2
    assert K % 2 == 1
    assert H % 2 == 0 and W % 2 == 0, "2x2 maxpool assumes even spatial dims"
    assert C_in == C, "competitive maxout skip requires in_channels == filters"
    # TODO(synk): is_input=True variant (BatchNorm replaces PReLU in seq1, no first maxout) not wired up.

    p = (K - 1) // 2
    HALO = 4 * p                              # halo for 4 chained 'same' convs
    S = min(strip_rows, H)                    # strip height: ~16-32 rows on v7x, 32-64 on v5e/v6e
    assert H % S == 0 and S % 2 == 0, "strip_rows must evenly divide H and be even"
    num_strips = H // S
    Bh = S + 2 * HALO
    Ho, Wo = H // 2, W // 2

    # Overlapping (strip + halo) windows, built once in HBM so plain BlockSpecs can pipeline them.
    # TODO(synk): at FastSurfer scale replace this (1 + 2*HALO/S)x input duplication with a manual
    #             halo DMA (memory_space=pl.ANY + pltpu.make_async_copy) fed by the same grid.
    x_pad = jnp.pad(x_nchw, ((0, 0), (0, 0), (HALO, HALO), (0, 0)))
    x_strips = jnp.stack(
        [x_pad[:, :, s * S:s * S + Bh, :] for s in range(num_strips)], axis=1
    ).reshape(N, num_strips, C, Bh * W)

    kernel = functools.partial(
        _encoding_cdb_kernel, K=K, H=H, W=W, C=C, S=S, HALO=HALO,
        roll_np=_pltpu_roll_is_numpy_style())   # probe runs outside jit (trace-time constant)

    out4, pooled, idx = pl.pallas_call(
        kernel,
        out_shape=(jax.ShapeDtypeStruct((N, C, H * W), jnp.float32),
                   jax.ShapeDtypeStruct((N, C, Ho * Wo), jnp.float32),
                   jax.ShapeDtypeStruct((N, C, Ho * Wo), jnp.int32)),
        grid=(N, num_strips),
        in_specs=[
            pl.BlockSpec(memory_space=pltpu.MemorySpace.SMEM),            # PReLU slopes (4,)
            pl.BlockSpec((1, 1, C, Bh * W), lambda n, s: (n, s, 0, 0)),   # input strip (+halo)
            pl.BlockSpec((4, C, K * K * C), lambda n, s: (0, 0, 0)),      # stacked folded weights (bf16)
            pl.BlockSpec((4, C, 1), lambda n, s: (0, 0, 0)),              # per-stage shift (bias+BN)
        ],
        out_specs=(pl.BlockSpec((1, C, S * W), lambda n, s: (n, 0, s)),          # out4 strip
                   pl.BlockSpec((1, C, (S // 2) * Wo), lambda n, s: (n, 0, s)),  # pooled strip
                   pl.BlockSpec((1, C, (S // 2) * Wo), lambda n, s: (n, 0, s))),  # indices strip
        compiler_params=pltpu.CompilerParams(
            dimension_semantics=("parallel", "parallel"),   # batch x strips -> both v7x TCs
            vmem_limit_bytes=48 * 1024 * 1024),
    )(weights["slopes"], x_strips, weights["w"], weights["shifts"])

    return (pooled.reshape(N, C, Ho, Wo),     # output_encoder (maxpooled)
            out4.reshape(N, C, H, W),         # output_block
            idx.reshape(N, C, Ho, Wo))        # indices (int32; torch returns int64)


# ---------------------------------------------------------------------------
# Deterministic synthetic parameters (torch Conv2d/BatchNorm2d layout) + fold for the kernel.
# ---------------------------------------------------------------------------
def init_encoding_cdb_raw_params(key, params):
    Cin, C, K = params["in_channels"], params["filters"], params["conv_kernel"]
    raw = []
    for i, k in enumerate(jax.random.split(key, 4)):
        cin = Cin if i == 0 else C
        k1, k2, k3, k4, k5, k6 = jax.random.split(k, 6)
        raw.append(dict(
            w=0.1 * jax.random.normal(k1, (C, cin, K, K), jnp.float32),   # Conv2d weight (OIHW)
            b=0.05 * jax.random.normal(k2, (C,), jnp.float32),            # Conv2d bias
            gamma=1.0 + 0.1 * jax.random.normal(k3, (C,), jnp.float32),   # BN weight
            beta=0.05 * jax.random.normal(k4, (C,), jnp.float32),         # BN bias
            mean=0.05 * jax.random.normal(k5, (C,), jnp.float32),         # BN running_mean
            var=1.0 + 0.1 * jax.random.uniform(k6, (C,), jnp.float32),    # BN running_var
            slope=jnp.float32(0.25),                                      # nn.PReLU() default init
        ))
    return raw


def fold_encoding_cdb_params(raw, K):
    """Fold inference-mode BN scale + conv bias into stacked bf16 weights / f32 per-channel shifts."""
    ws, shifts, slopes = [], [], []
    for rp in raw:
        scale = rp["gamma"] / jnp.sqrt(rp["var"] + _BN_EPS)
        w_folded = rp["w"] * scale[:, None, None, None]
        Cout, Cin = rp["w"].shape[:2]
        # (cout, cin, kh, kw) -> column (kh*K + kw)*Cin + cin, matching the kernel's im2col order
        ws.append(jnp.transpose(w_folded, (0, 2, 3, 1))
                  .reshape(Cout, K * K * Cin).astype(jnp.bfloat16))
        shifts.append((rp["beta"] + (rp["b"] - rp["mean"]) * scale).reshape(Cout, 1))
        slopes.append(rp["slope"])
    return dict(w=jnp.stack(ws),              # (4, C, K*K*C) bf16
                shifts=jnp.stack(shifts),     # (4, C, 1)     f32
                slopes=jnp.stack(slopes))     # (4,)          f32 (SMEM)


# ---------------------------------------------------------------------------
# Pure-JAX references for correctness checks.
# ---------------------------------------------------------------------------
def reference_forward(x, raw, params):
    """Independent lax.conv reference with the same bf16 operand rounding as the kernel."""
    K = params["conv_kernel"]
    p = (K - 1) // 2

    def seq(z, rp):
        scale = rp["gamma"] / jnp.sqrt(rp["var"] + _BN_EPS)
        w = (rp["w"] * scale[:, None, None, None]).astype(jnp.bfloat16)
        zp = jnp.where(z >= 0, z, rp["slope"] * z).astype(jnp.bfloat16)
        y = lax.conv_general_dilated(zp, w, (1, 1), ((p, p), (p, p)),
                                     dimension_numbers=("NCHW", "OIHW", "NCHW"),
                                     preferred_element_type=jnp.float32)
        shift = rp["beta"] + (rp["b"] - rp["mean"]) * scale
        return y + shift[None, :, None, None]

    out1 = jnp.maximum(x, seq(x, raw[0]))
    out2 = jnp.maximum(out1, seq(out1, raw[1]))
    out3 = jnp.maximum(out2, seq(out2, raw[2]))
    return seq(out3, raw[3])


def reference_maxpool(y):
    """MaxPool2d(2,2,return_indices=True) on NCHW with the same first-max tie rule as the kernel."""
    _, _, H_, W_ = y.shape
    ho = jnp.arange(H_ // 2)[:, None]
    wo = jnp.arange(W_ // 2)[None, :]
    best = y[:, :, 0::2, 0::2]
    bidx = jnp.broadcast_to((2 * ho) * W_ + 2 * wo, best.shape)
    for dh in range(2):
        for dw in range(2):
            if dh == 0 and dw == 0:
                continue
            cand = y[:, :, dh::2, dw::2]
            idx = (2 * ho + dh) * W_ + (2 * wo + dw)
            take = cand > best
            bidx = jnp.where(take, idx, bidx)
            best = jnp.where(take, cand, best)
    return best, bidx


if __name__ == "__main__":
    N, C, H, W = 2, 8, 32, 32
    params = dict(in_channels=C, filters=C, conv_kernel=3, conv_stride=1,
                  pool_kernel=2, pool_stride=2)   # in_channels == filters (maxout skip)

    key = jax.random.PRNGKey(0)
    kp, kx = jax.random.split(key)
    raw = init_encoding_cdb_raw_params(kp, params)
    weights = fold_encoding_cdb_params(raw, params["conv_kernel"])
    x = jax.random.normal(kx, (N, C, H, W), jnp.float32)

    out_encoder, out_block, indices = jax.block_until_ready(
        encoding_cdb_forward(x, weights, params, strip_rows=16))

    # Shapes / dtypes
    assert out_encoder.shape == (N, C, H // 2, W // 2)
    assert out_block.shape == (N, C, H, W)
    assert indices.shape == (N, C, H // 2, W // 2)
    assert indices.dtype == jnp.int32          # torch returns int64; widen outside if required
    assert bool(jnp.all(jnp.isfinite(out_block)))

    # Conv/BN/PReLU/maxout chain vs. independent lax.conv reference (same bf16 rounding).
    ref_block = reference_forward(x, raw, params)
    assert bool(jnp.allclose(out_block, ref_block, atol=2e-2, rtol=2e-2)), (
        float(jnp.max(jnp.abs(out_block - ref_block))))

    # Fused maxpool vs. an exact pool of the kernel's own block output (same tie rule).
    ref_pool_vals, ref_pool_idx = reference_maxpool(out_block)
    assert bool(jnp.allclose(out_encoder, ref_pool_vals, atol=1e-6))
    assert bool(jnp.array_equal(indices, ref_pool_idx))
    assert bool(jnp.all((indices >= 0) & (indices < H * W)))

    print("KERNEL_OK")
</pallas_src>

<mosaic_0001>
module attributes {stable_mosaic.version = 11 : i64} {
  func.func @k(%arg0: memref<8x128xf32, #tpu.memory_space<vmem>>, %arg1: memref<8x128xf32, #tpu.memory_space<vmem>>) attributes {dimension_semantics = [], scalar_prefetch = 0 : i64, scratch_operands = 0 : i64, tpu.core_type = #tpu.core_type<tc>} {
    %c0 = arith.constant 0 : index
    %c0_0 = arith.constant 0 : index
    %0 = vector.load %arg0[%c0, %c0_0] : memref<8x128xf32, #tpu.memory_space<vmem>>, vector<8x128xf32>
    %c1_i32 = arith.constant 1 : i32
    %1 = tpu.dynamic_rotate %0 by %c1_i32 dim 1 : vector<8x128xf32>, i32 -> vector<8x128xf32>
    %c0_1 = arith.constant 0 : index
    %c0_2 = arith.constant 0 : index
    %2 = vector.load %arg1[%c0_1, %c0_2] : memref<8x128xf32, #tpu.memory_space<vmem>>, vector<8x128xf32>
    tpu.vector_store %arg1[%c0_1, %c0_2], %1 {strides = array<i32>} : memref<8x128xf32, #tpu.memory_space<vmem>>, vector<8x128xf32>,
    return
  }
}

</mosaic_0001>

<llo_original>
// kernel: tpu_custom_call.1
$region0: #{tpu_custom_call.1}
  #allocation0 [shape = 'u32[]', space=smem, size = 0x4, offset = 0x4, fixed_abs, tag = 'smem constant byte address 0x4 - core index']
  #allocation1 [shape = 'u32[72,128]{1,0:T(1,128)}', space=vmem, size = 0x9000, scoped, tag = 'internal scratch']
  %s0 = inlined_call_operand.hbm [shape: f32[8,128], index: 0, kind: input, shape index: {}]
  %s1 = inlined_call_operand.hbm [shape: f32[8,128], index: 1, kind: output, shape index: {}]
  %s2 = sld [smem:[#allocation0]]
  $region18: #{tpu_custom_call.1} parent=0
    _
  %s4 = ssub.s32 1, %s2
  %s5 = scalar_select 0, %s4, %s2
  $region1: #{tpu_custom_call.1} parent=0
    #allocation2 [shape = 'u8[4096]{0}', space=vmem, size = 0x1000, scoped, tag = 'input window, operand 0, single buffered']
    #allocation3 [shape = 's32[1]{0}', space=sflag, size = 0x4, scoped, tag = 'scoped memory for tpu_custom_call.1']
    #allocation4 [shape = 's32[1]{0}', space=sflag, size = 0x4, scoped, tag = 'scoped memory for tpu_custom_call.1']
    #allocation5 [shape = 'u8[4096]{0}', space=vmem, size = 0x1000, scoped, tag = 'output window, operand 0, single buffered']
    %6 = vsyncpa [#allocation3], 0
    %7 = vsyncpa [#allocation4], 0
    // Predicated region
    $region2: #{tpu_custom_call.1} parent=1 // pred_check
      _
    $region3: #{tpu_custom_call.1} parent=1 // pred_check_branch
      %9 = sbr.rel (0) target = $region5
    $region4: #{tpu_custom_call.1} parent=1 // pred_region
      %11 = vsyncadd [#allocation3], 0
      %s13 = sshll.u32 %s0, 4
      %s14 = int_to_ptr.hbm [resolvable:$true] %s13
      %s15 = sshll.u32 [#allocation2], 4
      %s16 = int_to_ptr.vmem [resolvable:$true] %s15
      %18 = dma.hbm_to_vmem [thread:$0]  %s14, 128, %s16, [#allocation3]
    $region5: #{tpu_custom_call.1} parent=1 // pred_fallthru
      _
    // Predicated region
    $region6: #{tpu_custom_call.1} parent=1 // pred_check
      _
    $region7: #{tpu_custom_call.1} parent=1 // pred_check_branch
      %20 = sbr.rel (0) target = $region9
    $region8: #{tpu_custom_call.1} parent=1 // pred_region
      %22 = dma.done [#allocation3], 128
    $region9: #{tpu_custom_call.1} parent=1 // pred_fallthru
      _
    %v23 = vld [vmem:[#allocation2] sm:$0xff]
    %24 = vrot.lane.b32.xlu0 %v23, 1
    %v25 = vpop.permute.xlu0 %24
    %26 = vst [vmem:[#allocation5] sm:$0xff] %v25
    // Predicated region
    $region10: #{tpu_custom_call.1} parent=1 // pred_check
      _
    $region11: #{tpu_custom_call.1} parent=1 // pred_check_branch
      %28 = sbr.rel (0) target = $region13
    $region12: #{tpu_custom_call.1} parent=1 // pred_region
      %30 = vsyncadd [#allocation4], 0
      %s32 = sshll.u32 [#allocation5], 4
      %s33 = int_to_ptr.vmem [resolvable:$true] %s32
      %s34 = sshll.u32 %s1, 4
      %s35 = int_to_ptr.hbm [resolvable:$true] %s34
      %37 = dma.vmem_to_hbm [thread:$0]  %s33, 128, %s35, [#allocation4]
    $region13: #{tpu_custom_call.1} parent=1 // pred_fallthru
      _
    // Predicated region
    $region14: #{tpu_custom_call.1} parent=1 // pred_check
      _
    $region15: #{tpu_custom_call.1} parent=1 // pred_check_branch
      %39 = sbr.rel (0) target = $region17
    $region16: #{tpu_custom_call.1} parent=1 // pred_region
      %41 = dma.done [#allocation4], 128
    $region17: #{tpu_custom_call.1} parent=1 // pred_fallthru
      _
    %42 = vsyncpa [#allocation3], 1
    %43 = vsyncpa [#allocation4], 1

</llo_original>
